<compile_context>
chip_gen: v5e
topology: v5e:2x2
jax: 0.10.0
libtpu: 0.0.40
codegen_flags: <defaults>
</compile_context>

<pallas_src>
import functools

import jax
import jax.numpy as jnp
from jax.experimental import pallas as pl
from jax.experimental.pallas import tpu as pltpu

KSIZE = 5
PAD = KSIZE // 2
EPS = 1e-5


def decoder_block_kernel(x_ref, w1_ref, w2_ref, p_ref, o_ref, *, seq_len, c_real):
    # x_ref / o_ref block: (C_pad, bt*L); weights: (C_pad, K*C_pad); params (C_pad, 4)
    x = x_ref[...].astype(jnp.float32)
    w1 = w1_ref[...]
    w2 = w2_ref[...]
    p = p_ref[...].astype(jnp.float32)
    b1, b2, gamma, beta = p[:, 0:1], p[:, 1:2], p[:, 2:3], p[:, 3:4]  # (C, 1)

    C, BL = x.shape

    # Per-sample lane position (iota % L).  The per-tap masks both implement
    # the conv's zero padding AND stop roll() leaking across sample borders.
    pos = jax.lax.broadcasted_iota(jnp.int32, (C, BL), 1) % seq_len
    tap_masks = {}
    for t in range(KSIZE):                       # hoisted once, reused by both convs
        off = t - PAD
        if off != 0:
            tap_masks[off] = (pos + off >= 0) & (pos + off < seq_len)

    def conv(v, wf, b):
        pieces = []
        for t in range(KSIZE):                   # statically unrolled lane shifts (XLU)
            off = t - PAD                        # piece[ci, l] = v[ci, l + off] (0-padded)
            if off == 0:
                pieces.append(v)
            else:
                s = pltpu.roll(v, (-off) % BL, axis=1)
                pieces.append(jnp.where(tap_masks[off], s, 0.0))
        unf = jnp.concatenate(pieces, axis=0)    # (K*C, BL), 8-row-aligned pieces
        # ONE MXU push per conv for the whole block; bf16 inputs iff the wrapper
        # chose bf16 weights (C_pad >= 16); f32 accumulation always.
        return jnp.dot(wf, unf.astype(wf.dtype),
                       preferred_element_type=jnp.float32) + b

    h = jnp.maximum(conv(x, w1, b1), 0.0)        # conv1 + bias + relu
    y = conv(h, w2, b2) + x                      # conv2 + bias + residual

    # LayerNorm over channels == sublane reduction of the dense (C, BL) tile.
    inv_c = jnp.float32(1.0 / c_real)
    mean = jnp.sum(y, axis=0, keepdims=True) * inv_c            # (1, BL)
    cen = y - mean
    if c_real != C:
        # Zero the padded channels so they don't bias the variance.
        ch = jax.lax.broadcasted_iota(jnp.int32, (C, BL), 0)
        cen = jnp.where(ch < c_real, cen, 0.0)
    var = jnp.sum(cen * cen, axis=0, keepdims=True) * inv_c
    o_ref[...] = (cen * jax.lax.rsqrt(var + EPS) * gamma + beta).astype(o_ref.dtype)


@jax.jit
def decoder_block(x, w1, b1, w2, b2, gamma, beta):
    """x: (B, C, L) in NCW like the PyTorch module; returns (B, C, L)."""
    B, C, L = x.shape

    # Pad channels to the f32 sublane tile (8) so im2col assembly and the
    # channel-axis reductions stay aligned and copy-free.
    C_pad = ((C + 7) // 8) * 8
    pc = C_pad - C
    if pc:
        x = jnp.pad(x, ((0, 0), (0, pc), (0, 0)))
        w1 = jnp.pad(w1, ((0, pc), (0, pc), (0, 0)))
        w2 = jnp.pad(w2, ((0, pc), (0, pc), (0, 0)))
        b1 = jnp.pad(b1, ((0, pc),))
        b2 = jnp.pad(b2, ((0, pc),))
        gamma = jnp.pad(gamma, ((0, pc),))
        beta = jnp.pad(beta, ((0, pc),))

    # Fold conv weights once: (C_out, C_in, K) -> (C_out, K*C_in).  bf16 MXU
    # inputs only when C_pad >= 16 (bf16 packs 16 sublanes/vreg); f32 otherwise.
    w_dtype = jnp.bfloat16 if C_pad >= 16 else jnp.float32
    w1f = jnp.transpose(w1, (0, 2, 1)).reshape(C_pad, KSIZE * C_pad).astype(w_dtype)
    w2f = jnp.transpose(w2, (0, 2, 1)).reshape(C_pad, KSIZE * C_pad).astype(w_dtype)
    params = jnp.stack([b1, b2, gamma, beta], axis=1).astype(jnp.float32)  # (C, 4)

    # Lane-dense activation layout: (B, C, L) -> (C, B*L).  One matmul per conv
    # for the whole block; unmasked lane-dense stores for realistic B*L.
    xt = jnp.transpose(x, (1, 0, 2)).reshape(C_pad, B * L)

    # Grid: 1 step by default (single-TC v5e/v6e => grid splits are overhead).
    # 2-way "parallel" split along the batch/lane axis only when layout-legal
    # and large enough to amortize step overhead (pays on v7x's two TCs).
    n_steps = 1
    if B % 2 == 0 and ((B // 2) * L) % 128 == 0 and B * C_pad * L * 4 >= (1 << 20):
        n_steps = 2
    bt = B // n_steps
    blk_lanes = bt * L

    # VMEM limit from the actual block footprint: double-buffered in/out,
    # weights/params, plus in-kernel im2col + temporaries headroom.
    blk_bytes = C_pad * blk_lanes * 4
    w_bytes = 2 * C_pad * KSIZE * C_pad * jnp.dtype(w_dtype).itemsize
    vmem_limit = int(min(max(4 * blk_bytes + 2 * w_bytes + (2 * KSIZE + 8) * blk_bytes,
                             32 << 20), 64 << 20))

    kernel = functools.partial(decoder_block_kernel, seq_len=L, c_real=C)
    out = pl.pallas_call(
        kernel,
        out_shape=jax.ShapeDtypeStruct((C_pad, B * L), x.dtype),
        grid_spec=pltpu.PrefetchScalarGridSpec(
            num_scalar_prefetch=0,
            grid=(n_steps,),
            in_specs=[
                pl.BlockSpec((C_pad, blk_lanes), lambda i: (0, i)),      # activations
                pl.BlockSpec((C_pad, KSIZE * C_pad), lambda i: (0, 0)),  # w1 folded
                pl.BlockSpec((C_pad, KSIZE * C_pad), lambda i: (0, 0)),  # w2 folded
                pl.BlockSpec((C_pad, 4), lambda i: (0, 0)),              # b1|b2|g|b
            ],
            out_specs=pl.BlockSpec((C_pad, blk_lanes), lambda i: (0, i)),
        ),
        compiler_params=pltpu.CompilerParams(
            dimension_semantics=("parallel",),
            vmem_limit_bytes=vmem_limit),
    )(xt, w1f, w2f, params)

    # Back to NCW and drop the channel padding.
    out = jnp.transpose(out.reshape(C_pad, B, L), (1, 0, 2))
    return out[:, :C, :]


# ---------- pure-JAX reference (for correctness check) ----------
def ref_forward(x, w1, b1, w2, b2, gamma, beta):
    def conv1d(inp, w, b):
        y = jax.lax.conv_general_dilated(
            inp, w, window_strides=(1,),
            padding=((PAD, PAD),),
            dimension_numbers=("NCH", "OIH", "NCH"))
        return y + b[None, :, None]

    y = conv1d(x, w1, b1)
    y = jnp.maximum(y, 0.0)
    y = conv1d(y, w2, b2)
    y = y + x
    yp = jnp.transpose(y, (0, 2, 1))             # (B, L, C)
    mean = jnp.mean(yp, axis=-1, keepdims=True)
    var = jnp.mean((yp - mean) ** 2, axis=-1, keepdims=True)
    yn = (yp - mean) / jnp.sqrt(var + EPS) * gamma + beta
    return jnp.transpose(yn, (0, 2, 1))


if __name__ == "__main__":
    B, C, L = 2, 8, 16  # batch, n_decoder_filters, sequence length

    key = jax.random.PRNGKey(0)
    kx, kw1, kb1, kw2, kb2 = jax.random.split(key, 5)

    x = jax.random.normal(kx, (B, C, L), jnp.float32)
    # Conv1d weights: (C_out, C_in, K); biases: (C,)
    w1 = 0.1 * jax.random.normal(kw1, (C, C, KSIZE), jnp.float32)
    b1 = 0.1 * jax.random.normal(kb1, (C,), jnp.float32)
    w2 = 0.1 * jax.random.normal(kw2, (C, C, KSIZE), jnp.float32)
    b2 = 0.1 * jax.random.normal(kb2, (C,), jnp.float32)
    # LayerNorm params (default init: weight=1, bias=0)
    gamma = jnp.ones((C,), jnp.float32)
    beta = jnp.zeros((C,), jnp.float32)

    out = jax.block_until_ready(decoder_block(x, w1, b1, w2, b2, gamma, beta))
    ref = ref_forward(x, w1, b1, w2, b2, gamma, beta)
    assert out.shape == (B, C, L)
    assert jnp.allclose(out, ref, atol=1e-4, rtol=1e-4), (
        float(jnp.max(jnp.abs(out - ref))))

    print("KERNEL_OK")
</pallas_src>

<mosaic_0001>
module attributes {stable_mosaic.version = 11 : i64} {
  func.func @decoder_block_kernel(%arg0: i32, %arg1: memref<8x32xf32, #tpu.memory_space<vmem>>, %arg2: memref<8x40xf32, #tpu.memory_space<vmem>>, %arg3: memref<8x40xf32, #tpu.memory_space<vmem>>, %arg4: memref<8x4xf32, #tpu.memory_space<vmem>>, %arg5: memref<8x32xf32, #tpu.memory_space<vmem>>) attributes {dimension_semantics = [#tpu.dimension_semantics<parallel>], iteration_bounds = array<i64: 1>, scalar_prefetch = 0 : i64, scratch_operands = 0 : i64, tpu.core_type = #tpu.core_type<tc>, window_params = [{transform_indices = @transform_0, window_bounds = array<i64: 8, 32>}, {pipeline_mode = #tpu.pipeline_mode<synchronous>, transform_indices = @transform_1, window_bounds = array<i64: 8, 40>}, {pipeline_mode = #tpu.pipeline_mode<synchronous>, transform_indices = @transform_2, window_bounds = array<i64: 8, 40>}, {pipeline_mode = #tpu.pipeline_mode<synchronous>, transform_indices = @transform_3, window_bounds = array<i64: 8, 4>}, {transform_indices = @transform_4, window_bounds = array<i64: 8, 32>}]} {
    %c0 = arith.constant 0 : index
    %c0_0 = arith.constant 0 : index
    %0 = vector.load %arg1[%c0, %c0_0] : memref<8x32xf32, #tpu.memory_space<vmem>>, vector<8x32xf32>
    %c0_1 = arith.constant 0 : index
    %c0_2 = arith.constant 0 : index
    %1 = vector.load %arg2[%c0_1, %c0_2] : memref<8x40xf32, #tpu.memory_space<vmem>>, vector<8x40xf32>
    %c0_3 = arith.constant 0 : index
    %c0_4 = arith.constant 0 : index
    %2 = vector.load %arg3[%c0_3, %c0_4] : memref<8x40xf32, #tpu.memory_space<vmem>>, vector<8x40xf32>
    %c0_5 = arith.constant 0 : index
    %c0_6 = arith.constant 0 : index
    %3 = vector.load %arg4[%c0_5, %c0_6] : memref<8x4xf32, #tpu.memory_space<vmem>>, vector<8x4xf32>
    %4 = vector.extract_strided_slice %3 {offsets = [0, 0], sizes = [8, 1], strides = [1, 1]} : vector<8x4xf32> to vector<8x1xf32>
    %5 = vector.extract_strided_slice %3 {offsets = [0, 1], sizes = [8, 1], strides = [1, 1]} : vector<8x4xf32> to vector<8x1xf32>
    %6 = vector.extract_strided_slice %3 {offsets = [0, 2], sizes = [8, 1], strides = [1, 1]} : vector<8x4xf32> to vector<8x1xf32>
    %7 = vector.extract_strided_slice %3 {offsets = [0, 3], sizes = [8, 1], strides = [1, 1]} : vector<8x4xf32> to vector<8x1xf32>
    %8 = tpu.iota {dimensions = array<i32: 1>} : vector<8x32xi32>
    %c16_i32 = arith.constant 16 : i32
    %c0_i32 = arith.constant 0 : i32
    %9 = arith.cmpi eq, %c16_i32, %c0_i32 : i32
    %c1_i32 = arith.constant 1 : i32
    %10 = arith.select %9, %c1_i32, %c16_i32 : i32
    %11 = vector.broadcast %10 : i32 to vector<8x32xi32>
    %12 = arith.remsi %8, %11 : vector<8x32xi32>
    %c0_i32_7 = arith.constant 0 : i32
    %13 = vector.broadcast %c0_i32_7 : i32 to vector<8x32xi32>
    %14 = arith.cmpi ne, %12, %13 : vector<8x32xi32>
    %c0_i32_8 = arith.constant 0 : i32
    %15 = vector.broadcast %c0_i32_8 : i32 to vector<8x32xi32>
    %16 = arith.cmpi slt, %12, %15 : vector<8x32xi32>
    %c0_i32_9 = arith.constant 0 : i32
    %17 = arith.cmpi slt, %10, %c0_i32_9 : i32
    %18 = vector.broadcast %17 : i1 to vector<8x32xi1>
    %19 = vector.broadcast %18 : vector<8x32xi1> to vector<8x32xi1>
    %20 = arith.xori %16, %19 : vector<8x32xi1>
    %21 = arith.andi %20, %14 : vector<8x32xi1>
    %22 = vector.broadcast %10 : i32 to vector<8x32xi32>
    %23 = arith.addi %12, %22 : vector<8x32xi32>
    %24 = arith.select %21, %23, %12 : vector<8x32xi1>, vector<8x32xi32>
    %c-2_i32 = arith.constant -2 : i32
    %25 = vector.broadcast %c-2_i32 : i32 to vector<8x32xi32>
    %26 = arith.addi %24, %25 : vector<8x32xi32>
    %c0_i32_10 = arith.constant 0 : i32
    %27 = vector.broadcast %c0_i32_10 : i32 to vector<8x32xi32>
    %28 = arith.cmpi sge, %26, %27 : vector<8x32xi32>
    %c-2_i32_11 = arith.constant -2 : i32
    %29 = vector.broadcast %c-2_i32_11 : i32 to vector<8x32xi32>
    %30 = arith.addi %24, %29 : vector<8x32xi32>
    %c16_i32_12 = arith.constant 16 : i32
    %31 = vector.broadcast %c16_i32_12 : i32 to vector<8x32xi32>
    %32 = arith.cmpi slt, %30, %31 : vector<8x32xi32>
    %33 = arith.andi %28, %32 : vector<8x32xi1>
    %c-1_i32 = arith.constant -1 : i32
    %34 = vector.broadcast %c-1_i32 : i32 to vector<8x32xi32>
    %35 = arith.addi %24, %34 : vector<8x32xi32>
    %c0_i32_13 = arith.constant 0 : i32
    %36 = vector.broadcast %c0_i32_13 : i32 to vector<8x32xi32>
    %37 = arith.cmpi sge, %35, %36 : vector<8x32xi32>
    %c-1_i32_14 = arith.constant -1 : i32
    %38 = vector.broadcast %c-1_i32_14 : i32 to vector<8x32xi32>
    %39 = arith.addi %24, %38 : vector<8x32xi32>
    %c16_i32_15 = arith.constant 16 : i32
    %40 = vector.broadcast %c16_i32_15 : i32 to vector<8x32xi32>
    %41 = arith.cmpi slt, %39, %40 : vector<8x32xi32>
    %42 = arith.andi %37, %41 : vector<8x32xi1>
    %c1_i32_16 = arith.constant 1 : i32
    %43 = vector.broadcast %c1_i32_16 : i32 to vector<8x32xi32>
    %44 = arith.addi %24, %43 : vector<8x32xi32>
    %c0_i32_17 = arith.constant 0 : i32
    %45 = vector.broadcast %c0_i32_17 : i32 to vector<8x32xi32>
    %46 = arith.cmpi sge, %44, %45 : vector<8x32xi32>
    %c1_i32_18 = arith.constant 1 : i32
    %47 = vector.broadcast %c1_i32_18 : i32 to vector<8x32xi32>
    %48 = arith.addi %24, %47 : vector<8x32xi32>
    %c16_i32_19 = arith.constant 16 : i32
    %49 = vector.broadcast %c16_i32_19 : i32 to vector<8x32xi32>
    %50 = arith.cmpi slt, %48, %49 : vector<8x32xi32>
    %51 = arith.andi %46, %50 : vector<8x32xi1>
    %c2_i32 = arith.constant 2 : i32
    %52 = vector.broadcast %c2_i32 : i32 to vector<8x32xi32>
    %53 = arith.addi %24, %52 : vector<8x32xi32>
    %c0_i32_20 = arith.constant 0 : i32
    %54 = vector.broadcast %c0_i32_20 : i32 to vector<8x32xi32>
    %55 = arith.cmpi sge, %53, %54 : vector<8x32xi32>
    %c2_i32_21 = arith.constant 2 : i32
    %56 = vector.broadcast %c2_i32_21 : i32 to vector<8x32xi32>
    %57 = arith.addi %24, %56 : vector<8x32xi32>
    %c16_i32_22 = arith.constant 16 : i32
    %58 = vector.broadcast %c16_i32_22 : i32 to vector<8x32xi32>
    %59 = arith.cmpi slt, %57, %58 : vector<8x32xi32>
    %60 = arith.andi %55, %59 : vector<8x32xi1>
    %c2_i32_23 = arith.constant 2 : i32
    %61 = tpu.dynamic_rotate %0 by %c2_i32_23 dim 1 : vector<8x32xf32>, i32 -> vector<8x32xf32>
    %cst = arith.constant 0.000000e+00 : f32
    %62 = vector.broadcast %cst : f32 to vector<8x32xf32>
    %63 = arith.select %33, %61, %62 : vector<8x32xi1>, vector<8x32xf32>
    %c1_i32_24 = arith.constant 1 : i32
    %64 = tpu.dynamic_rotate %0 by %c1_i32_24 dim 1 : vector<8x32xf32>, i32 -> vector<8x32xf32>
    %cst_25 = arith.constant 0.000000e+00 : f32
    %65 = vector.broadcast %cst_25 : f32 to vector<8x32xf32>
    %66 = arith.select %42, %64, %65 : vector<8x32xi1>, vector<8x32xf32>
    %c31_i32 = arith.constant 31 : i32
    %67 = tpu.dynamic_rotate %0 by %c31_i32 dim 1 : vector<8x32xf32>, i32 -> vector<8x32xf32>
    %cst_26 = arith.constant 0.000000e+00 : f32
    %68 = vector.broadcast %cst_26 : f32 to vector<8x32xf32>
    %69 = arith.select %51, %67, %68 : vector<8x32xi1>, vector<8x32xf32>
    %c30_i32 = arith.constant 30 : i32
    %70 = tpu.dynamic_rotate %0 by %c30_i32 dim 1 : vector<8x32xf32>, i32 -> vector<8x32xf32>
    %cst_27 = arith.constant 0.000000e+00 : f32
    %71 = vector.broadcast %cst_27 : f32 to vector<8x32xf32>
    %72 = arith.select %60, %70, %71 : vector<8x32xi1>, vector<8x32xf32>
    %73 = tpu.concatenate %63, %66, %0, %69, %72 in 0 : vector<8x32xf32>, vector<8x32xf32>, vector<8x32xf32>, vector<8x32xf32>, vector<8x32xf32> -> vector<40x32xf32>
    %cst_28 = arith.constant dense<0.000000e+00> : vector<8x32xf32>
    %74 = tpu.matmul %1, %73, %cst_28 {dimension_numbers = #tpu.dot_dimension_numbers<[1], [0], [0], [1], [0, 0, 1, 1], [], []>} : vector<8x40xf32>, vector<40x32xf32>, vector<8x32xf32> -> vector<8x32xf32>
    %75 = vector.broadcast %4 : vector<8x1xf32> to vector<8x32xf32>
    %76 = arith.addf %74, %75 : vector<8x32xf32>
    %cst_29 = arith.constant 0.000000e+00 : f32
    %77 = vector.broadcast %cst_29 : f32 to vector<8x32xf32>
    %78 = arith.maximumf %76, %77 : vector<8x32xf32>
    %c2_i32_30 = arith.constant 2 : i32
    %79 = tpu.dynamic_rotate %78 by %c2_i32_30 dim 1 : vector<8x32xf32>, i32 -> vector<8x32xf32>
    %cst_31 = arith.constant 0.000000e+00 : f32
    %80 = vector.broadcast %cst_31 : f32 to vector<8x32xf32>
    %81 = arith.select %33, %79, %80 : vector<8x32xi1>, vector<8x32xf32>
    %c1_i32_32 = arith.constant 1 : i32
    %82 = tpu.dynamic_rotate %78 by %c1_i32_32 dim 1 : vector<8x32xf32>, i32 -> vector<8x32xf32>
    %cst_33 = arith.constant 0.000000e+00 : f32
    %83 = vector.broadcast %cst_33 : f32 to vector<8x32xf32>
    %84 = arith.select %42, %82, %83 : vector<8x32xi1>, vector<8x32xf32>
    %c31_i32_34 = arith.constant 31 : i32
    %85 = tpu.dynamic_rotate %78 by %c31_i32_34 dim 1 : vector<8x32xf32>, i32 -> vector<8x32xf32>
    %cst_35 = arith.constant 0.000000e+00 : f32
    %86 = vector.broadcast %cst_35 : f32 to vector<8x32xf32>
    %87 = arith.select %51, %85, %86 : vector<8x32xi1>, vector<8x32xf32>
    %c30_i32_36 = arith.constant 30 : i32
    %88 = tpu.dynamic_rotate %78 by %c30_i32_36 dim 1 : vector<8x32xf32>, i32 -> vector<8x32xf32>
    %cst_37 = arith.constant 0.000000e+00 : f32
    %89 = vector.broadcast %cst_37 : f32 to vector<8x32xf32>
    %90 = arith.select %60, %88, %89 : vector<8x32xi1>, vector<8x32xf32>
    %91 = tpu.concatenate %81, %84, %78, %87, %90 in 0 : vector<8x32xf32>, vector<8x32xf32>, vector<8x32xf32>, vector<8x32xf32>, vector<8x32xf32> -> vector<40x32xf32>
    %cst_38 = arith.constant dense<0.000000e+00> : vector<8x32xf32>
    %92 = tpu.matmul %2, %91, %cst_38 {dimension_numbers = #tpu.dot_dimension_numbers<[1], [0], [0], [1], [0, 0, 1, 1], [], []>} : vector<8x40xf32>, vector<40x32xf32>, vector<8x32xf32> -> vector<8x32xf32>
    %93 = vector.broadcast %5 : vector<8x1xf32> to vector<8x32xf32>
    %94 = arith.addf %92, %93 : vector<8x32xf32>
    %95 = arith.addf %94, %0 : vector<8x32xf32>
    %cst_39 = arith.constant dense<0.000000e+00> : vector<32xf32>
    %96 = vector.multi_reduction <add>, %95, %cst_39 [0] : vector<8x32xf32> to vector<32xf32>
    %97 = vector.shape_cast %96 : vector<32xf32> to vector<1x32xf32>
    %cst_40 = arith.constant 1.250000e-01 : f32
    %98 = vector.broadcast %cst_40 : f32 to vector<1x32xf32>
    %99 = arith.mulf %97, %98 : vector<1x32xf32>
    %100 = vector.broadcast %99 : vector<1x32xf32> to vector<8x32xf32>
    %101 = arith.subf %95, %100 : vector<8x32xf32>
    %102 = arith.mulf %101, %101 : vector<8x32xf32>
    %cst_41 = arith.constant dense<0.000000e+00> : vector<32xf32>
    %103 = vector.multi_reduction <add>, %102, %cst_41 [0] : vector<8x32xf32> to vector<32xf32>
    %104 = vector.shape_cast %103 : vector<32xf32> to vector<1x32xf32>
    %cst_42 = arith.constant 1.250000e-01 : f32
    %105 = vector.broadcast %cst_42 : f32 to vector<1x32xf32>
    %106 = arith.mulf %104, %105 : vector<1x32xf32>
    %cst_43 = arith.constant 9.99999974E-6 : f32
    %107 = vector.broadcast %cst_43 : f32 to vector<1x32xf32>
    %108 = arith.addf %106, %107 : vector<1x32xf32>
    %109 = math.rsqrt %108 : vector<1x32xf32>
    %110 = vector.broadcast %109 : vector<1x32xf32> to vector<8x32xf32>
    %111 = arith.mulf %101, %110 : vector<8x32xf32>
    %112 = vector.broadcast %6 : vector<8x1xf32> to vector<8x32xf32>
    %113 = arith.mulf %111, %112 : vector<8x32xf32>
    %114 = vector.broadcast %7 : vector<8x1xf32> to vector<8x32xf32>
    %115 = arith.addf %113, %114 : vector<8x32xf32>
    %c0_44 = arith.constant 0 : index
    %c0_45 = arith.constant 0 : index
    %116 = vector.load %arg5[%c0_44, %c0_45] : memref<8x32xf32, #tpu.memory_space<vmem>>, vector<8x32xf32>
    tpu.vector_store %arg5[%c0_44, %c0_45], %115 {strides = array<i32>} : memref<8x32xf32, #tpu.memory_space<vmem>>, vector<8x32xf32>,
    return
  }
  func.func @transform_0(%arg0: i32) -> (i32, i32) {
    %c0_i32 = arith.constant 0 : i32
    %c0_i32_0 = arith.constant 0 : i32
    return %c0_i32, %arg0 : i32, i32
  }
  func.func @transform_1(%arg0: i32) -> (i32, i32) {
    %c0_i32 = arith.constant 0 : i32
    %c0_i32_0 = arith.constant 0 : i32
    %c0_i32_1 = arith.constant 0 : i32
    return %c0_i32, %c0_i32_0 : i32, i32
  }
  func.func @transform_2(%arg0: i32) -> (i32, i32) {
    %c0_i32 = arith.constant 0 : i32
    %c0_i32_0 = arith.constant 0 : i32
    %c0_i32_1 = arith.constant 0 : i32
    return %c0_i32, %c0_i32_0 : i32, i32
  }
  func.func @transform_3(%arg0: i32) -> (i32, i32) {
    %c0_i32 = arith.constant 0 : i32
    %c0_i32_0 = arith.constant 0 : i32
    %c0_i32_1 = arith.constant 0 : i32
    return %c0_i32, %c0_i32_0 : i32, i32
  }
  func.func @transform_4(%arg0: i32) -> (i32, i32) {
    %c0_i32 = arith.constant 0 : i32
    %c0_i32_0 = arith.constant 0 : i32
    return %c0_i32, %arg0 : i32, i32
  }
}

</mosaic_0001>

<llo_original>
// kernel: decoder_block.1
$region0: #{decoder_block.1}
  #allocation0 [shape = 'u32[]', space=smem, size = 0x4, offset = 0x4, fixed_abs, tag = 'smem constant byte address 0x4 - core index']
  #allocation1 [shape = 'u32[72,128]{1,0:T(1,128)}', space=vmem, size = 0x9000, scoped, tag = 'internal scratch']
  %s0 = inlined_call_operand.vmem [shape: f32[8,32], index: 0, kind: input, shape index: {}]
  %s1 = inlined_call_operand.vmem [shape: f32[8,40], index: 1, kind: input, shape index: {}]
  %s2 = inlined_call_operand.vmem [shape: f32[8,40], index: 2, kind: input, shape index: {}]
  %s3 = inlined_call_operand.vmem [shape: f32[8,4], index: 3, kind: input, shape index: {}]
  %s4 = inlined_call_operand.vmem [shape: f32[8,32], index: 4, kind: output, shape index: {}]
  %s5 = sld [smem:[#allocation0]]
  $region26: #{decoder_block.1} parent=0
    _
  %s7 = ssub.s32 1, %s5
  %s8 = scalar_select 0, %s7, %s5
  // Predicated region
  $region2: #{decoder_block.1} parent=0 // pred_check
    _
  $region3: #{decoder_block.1} parent=0 // pred_check_branch
    %10 = sbr.rel (0) target = $region5
  $region4: #{decoder_block.1} parent=0 // pred_region
    _
  $region5: #{decoder_block.1} parent=0 // pred_fallthru
    _
  // Predicated region
  $region6: #{decoder_block.1} parent=0 // pred_check
    _
  $region7: #{decoder_block.1} parent=0 // pred_check_branch
    %12 = sbr.rel (0) target = $region9
  $region8: #{decoder_block.1} parent=0 // pred_region
    _
  $region9: #{decoder_block.1} parent=0 // pred_fallthru
    _
  // Predicated region
  $region10: #{decoder_block.1} parent=0 // pred_check
    _
  $region11: #{decoder_block.1} parent=0 // pred_check_branch
    %14 = sbr.rel (0) target = $region13
  $region12: #{decoder_block.1} parent=0 // pred_region
    _
  $region13: #{decoder_block.1} parent=0 // pred_fallthru
    _
  // Predicated region
  $region14: #{decoder_block.1} parent=0 // pred_check
    _
  $region15: #{decoder_block.1} parent=0 // pred_check_branch
    %16 = sbr.rel (0) target = $region17
  $region16: #{decoder_block.1} parent=0 // pred_region
    _
  $region17: #{decoder_block.1} parent=0 // pred_fallthru
    _
  %v17 = vld [vmem:[%s0] sm:$0xff]
  %v18 = vld [vmem:[%s1] sm:$0xff]
  %v19 = vld [vmem:[%s2] sm:$0xff]
  %v20 = vld [vmem:[%s3] sm:$0xff]
  %v21 = vlaneseq
  %v22 = vand.u32 %v21, 127
  %vm23 = vcmp.lt.s32.totalorder %v22, 0
  %v24 = vsub.s32 0, %v22
  %v25 = vsel %vm23, %v24, %v22
  %v26 = vshrl.u32 %v25, 4
  %v27 = vand.u32 %v25, 15
  %v28 = vsub.s32 0, %v27
  %v29 = vsel %vm23, %v28, %v27
  %vm30 = vcmp.ne.s32.totalorder %v29, 0
  %vm31 = vcmp.lt.s32.totalorder %v29, 0
  %vm32 = vmand %vm31, %vm30
  %v33 = vadd.s32 %v29, 16
  %v34 = vsel %vm32, %v33, %v29
  %v35 = vadd.s32 %v34, 4294967294
  %vm36 = vcmp.ge.s32.totalorder %v35, 0
  %vm37 = vcmp.lt.s32.totalorder %v35, 16
  %vm38 = vmand %vm36, %vm37
  %v39 = vadd.s32 %v34, 4294967295
  %vm40 = vcmp.ge.s32.totalorder %v39, 0
  %vm41 = vcmp.lt.s32.totalorder %v39, 16
  %vm42 = vmand %vm40, %vm41
  %v43 = vadd.s32 %v34, 1
  %vm44 = vcmp.ge.s32.totalorder %v43, 0
  %vm45 = vcmp.lt.s32.totalorder %v43, 16
  %vm46 = vmand %vm44, %vm45
  %v47 = vadd.s32 %v34, 2
  %vm48 = vcmp.ge.s32.totalorder %v47, 0
  %vm49 = vcmp.lt.s32.totalorder %v47, 16
  %vm50 = vmand %vm48, %vm49
  %vm51 = vcmask 1047808
  %52 = vrot.lane.b32.xlu0 %v17, 32
  %v53 = vpop.permute.xlu0 %52
  %v54 = vsel %vm51, %v53, %v17
  %55 = vrot.lane.b32.xlu0 %v54, 32
  %v56 = vpop.permute.xlu0 %55
  %v57 = vsel %vm51, %v56, %v17
  %59 = vrot.lane.b32.xlu0 %v57, 98
  %v60 = vpop.permute.xlu0 %59
  %v62 = vsel %vm38, %v60, 0.0
  %63 = vrot.lane.b32.xlu0 %v57, 97
  %v64 = vpop.permute.xlu0 %63
  %v66 = vsel %vm42, %v64, 0.0
  %67 = vrot.lane.b32.xlu0 %v57, 127
  %v68 = vpop.permute.xlu0 %67
  %v70 = vsel %vm46, %v68, 0.0
  %71 = vrot.lane.b32.xlu0 %v57, 126
  %v72 = vpop.permute.xlu0 %71
  %v74 = vsel %vm50, %v72, 0.0
  %76 = vset.pattern.permute.xlu0 0
  %77 = vperm.xlu0 %76, %v20
  %v78 = vpop.permute.xlu0 %77
  %vm80 = vcmask 326656
  %v82 = vsel %vm80, %v18, 0
  %84 = vmatpush.msra.mxu0 0.0
  %85 = vmatpush.msra.mxu0 0.0
  %86 = vmatpush.msra.mxu0 0.0
  %87 = vmatpush.msra.mxu0 0.0
  %88 = vmatpush.msra.mxu0 0.0
  %89 = vmatpush.msra.mxu0 0.0
  %90 = vmatpush.msra.mxu0 0.0
  %91 = vmatpush.msra.mxu0 0.0
  %92 = vmatpush.msra.mxu0 0.0
  %93 = vmatpush.msra.mxu0 0.0
  %94 = vmatpush.msra.mxu0 0.0
  %95 = vmatpush.msra.mxu0 %v74
  %96 = vmatpush.msra.mxu0 %v70
  %97 = vmatpush.msra.mxu0 %v17
  %98 = vmatpush.msra.mxu0 %v66
  %99 = vmatpush.msra.mxu0 %v62
  %100 = vmatmul.f32.gmra.mxu0 %v82
  %v101 = vpop.f32.mrf.mxu0
  %v102 = vadd.f32 %v78, %v101
  %103 = vdwg.mxu0
  %v104 = vmax.f32 %v102, 0.0
  %105 = vrot.lane.b32.xlu0 %v104, 32
  %v106 = vpop.permute.xlu0 %105
  %v107 = vsel %vm51, %v106, %v104
  %108 = vrot.lane.b32.xlu0 %v107, 32
  %v109 = vpop.permute.xlu0 %108
  %v110 = vsel %vm51, %v109, %v104
  %112 = vrot.lane.b32.xlu0 %v110, 98
  %v113 = vpop.permute.xlu0 %112
  %v115 = vsel %vm38, %v113, 0.0
  %116 = vrot.lane.b32.xlu0 %v110, 97
  %v117 = vpop.permute.xlu0 %116
  %v119 = vsel %vm42, %v117, 0.0
  %120 = vrot.lane.b32.xlu0 %v110, 127
  %v121 = vpop.permute.xlu0 %120
  %v123 = vsel %vm46, %v121, 0.0
  %124 = vrot.lane.b32.xlu0 %v110, 126
  %v125 = vpop.permute.xlu0 %124
  %v127 = vsel %vm50, %v125, 0.0
  %128 = vset.pattern.permute.xlu0 1
  %129 = vperm.xlu0 %128, %v20
  %v130 = vpop.permute.xlu0 %129
  %v133 = vsel %vm80, %v19, 0
  %135 = vmatpush.msra.mxu0 0.0
  %136 = vmatpush.msra.mxu0 0.0
  %137 = vmatpush.msra.mxu0 0.0
  %138 = vmatpush.msra.mxu0 0.0
  %139 = vmatpush.msra.mxu0 0.0
  %140 = vmatpush.msra.mxu0 0.0
  %141 = vmatpush.msra.mxu0 0.0
  %142 = vmatpush.msra.mxu0 0.0
  %143 = vmatpush.msra.mxu0 0.0
  %144 = vmatpush.msra.mxu0 0.0
  %145 = vmatpush.msra.mxu0 0.0
  %146 = vmatpush.msra.mxu0 %v127
  %147 = vmatpush.msra.mxu0 %v123
  %148 = vmatpush.msra.mxu0 %v104
  %149 = vmatpush.msra.mxu0 %v119
  %150 = vmatpush.msra.mxu0 %v115
  %151 = vmatmul.f32.gmra.mxu0 %v133
  %v152 = vpop.f32.mrf.mxu0
  %v153 = vadd.f32 %v130, %v152
  %154 = vdwg.mxu0
  %v155 = vadd.f32 %v153, %v17
  %vm156 = vcmask 261120
  %v157 = vsel %vm156, %v155, 0.0
  %v158 = vrot.slane %v157, 4
  %v159 = vadd.f32 %v157, %v158
  %v160 = vrot.slane %v159, 2
  %v161 = vadd.f32 %v159, %v160
  %v162 = vrot.slane %v161, 1
  %v163 = vadd.f32 %v161, %v162
  %v164 = vmul.f32 %v163, 0.125
  %v165 = vsub.f32 %v155, %v164
  %v166 = vmul.f32 %v165, %v165
  %v167 = vsel %vm156, %v166, 0.0
  %v168 = vrot.slane %v167, 4
  %v169 = vadd.f32 %v167, %v168
  %v170 = vrot.slane %v169, 2
  %v171 = vadd.f32 %v169, %v170
  %v172 = vrot.slane %v171, 1
  %v173 = vadd.f32 %v171, %v172
  %v174 = vmul.f32 %v173, 0.125
  %v175 = vadd.f32 %v174, 1e-05
  %v176 = vrsqrt.pop %v175
  %v177 = vmul.f32 %v176, %v175
  %v178 = vmul.f32 %v177, %v176
  %v179 = vmul.f32 0.5, %v178
  %v180 = vsub.f32 1.5, %v179
  %v181 = vmul.f32 %v176, %v180
  %vm182 = vweird.f32 %v175
  %vm183 = vweird.f32 %v176
  %vm184 = vmor %vm182, %vm183
  %v185 = vsel %vm184, %v176, %v181
  %v186 = vmul.f32 %v165, %v185
  %187 = vset.pattern.permute.xlu0 2
  %188 = vperm.xlu0 %187, %v20
  %v189 = vpop.permute.xlu0 %188
  %v191 = vmul.f32 %v186, %v189
  %192 = vset.pattern.permute.xlu0 3
  %193 = vperm.xlu0 %192, %v20
  %v194 = vpop.permute.xlu0 %193
  %v196 = vadd.f32 %v191, %v194
  %197 = vst.msk [vmem:[%s4] sm:$0xff] %vm156, %v196
  // Predicated region
  $region18: #{decoder_block.1} parent=0 // pred_check
    _
  $region19: #{decoder_block.1} parent=0 // pred_check_branch
    %199 = sbr.rel (0) target = $region21
  $region20: #{decoder_block.1} parent=0 // pred_region
    _
  $region21: #{decoder_block.1} parent=0 // pred_fallthru
    _
  // Predicated region
  $region22: #{decoder_block.1} parent=0 // pred_check
    _
  $region23: #{decoder_block.1} parent=0 // pred_check_branch
    %201 = sbr.rel (0) target = $region25
  $region24: #{decoder_block.1} parent=0 // pred_region
    _
  $region25: #{decoder_block.1} parent=0 // pred_fallthru
    _

</llo_original>
